<compile_context>
chip_gen: v7x
topology: tpu7x:2x2x1
jax: 0.10.0
libtpu: 0.0.40
codegen_flags: <defaults>
</compile_context>

<pallas_src>
import functools

import numpy as np
import jax
import jax.numpy as jnp
from jax.experimental import pallas as pl
from jax.experimental.pallas import tpu as pltpu


def _round_up(n, m):
    return ((n + m - 1) // m) * m


def _softplus(z):
    # numerically-stable softplus (BCEWithLogitsLoss form): max(z, 0) + log1p(exp(-|z|))
    return jnp.maximum(z, 0.0) + jnp.log1p(jnp.exp(-jnp.abs(z)))


def sigmoid_bce_loss_kernel(x_ref, emb_ref, out_ref, *, batch_size, num_neg, block_b):
    """x_ref: (block_b, D) bf16; emb_ref: (K+1, block_b, D) bf16 (group 0 = positive);
    out_ref: (1, 8, 128) f32 per-tile partial loss."""
    i = pl.program_id(0)

    x = x_ref[...].astype(jnp.float32)        # (block_b, D)
    e = emb_ref[...].astype(jnp.float32)      # (K+1, block_b, D)

    # logits[j, b] = <emb[j, b, :], x[b, :]>  -- VPU multiply + XLU lane reduce.
    logits = jnp.sum(e * x[None, :, :], axis=-1, keepdims=True)   # (K+1, block_b, 1)

    # Mask rows that are only batch padding (when batch_size % block_b != 0).
    row = i * block_b + jax.lax.broadcasted_iota(jnp.int32, (block_b, 1), 0)
    valid = (row < batch_size).astype(jnp.float32)                # (block_b, 1)

    # BCEWithLogitsLoss(mean): label 1 -> softplus(-z); label 0 -> softplus(+z)
    pos_sum = jnp.sum(_softplus(-logits[0]) * valid)              # positives (group 0)
    neg_sum = jnp.sum(_softplus(logits[1:]) * valid[None, :, :])  # negatives (groups 1..K)

    partial = pos_sum * (1.0 / batch_size) + neg_sum * (1.0 / (batch_size * num_neg))
    out_ref[...] = jnp.broadcast_to(partial.astype(jnp.float32), out_ref.shape)


def sigmoid_bce_loss(input_embedding, output_weights, target_index, neg_indices,
                     *, block_b=None, compute_dtype=jnp.bfloat16):
    """input_embedding: (B, D) f32; output_weights: (V, D) f32;
    target_index: (B,) i32; neg_indices: (B, K) i32 -> scalar loss (f32)."""
    B, D = input_embedding.shape
    K = neg_indices.shape[1]
    K1 = K + 1

    # bf16 on the wire (HBM-bound kernel); f32 math inside the kernel.
    x = input_embedding.astype(compute_dtype)
    table = output_weights.astype(compute_dtype)

    # Gather [positive | negatives] as one (K+1, B, D) slab so the kernel's tiled
    # last-two dims stay (block_b, D): no sublane padding from a (B, K, D) layout.
    combined_idx = jnp.concatenate(
        [target_index.astype(jnp.int32)[None, :],
         jnp.transpose(neg_indices.astype(jnp.int32))], axis=0)       # (K+1, B)
    emb = jnp.take(table, combined_idx, axis=0)                       # (K+1, B, D)

    # Batch tiling. block_b <= 256 keeps the double-buffered VMEM footprint tiny on
    # every generation (v5e 16 MiB scoped default, v7x 64 MiB physical).
    if block_b is None:
        block_b = min(256, _round_up(B, 8))
    block_b = _round_up(block_b, 8)
    Bp = _round_up(B, block_b)
    if Bp != B:
        x = jnp.pad(x, ((0, Bp - B), (0, 0)))
        emb = jnp.pad(emb, ((0, 0), (0, Bp - B), (0, 0)))
    num_tiles = Bp // block_b

    kernel = functools.partial(
        sigmoid_bce_loss_kernel, batch_size=B, num_neg=K, block_b=block_b)

    partials = pl.pallas_call(
        kernel,
        out_shape=jax.ShapeDtypeStruct((num_tiles, 8, 128), jnp.float32),
        grid=(num_tiles,),
        in_specs=[
            pl.BlockSpec((block_b, D), lambda i: (i, 0)),
            pl.BlockSpec((K1, block_b, D), lambda i: (0, i, 0)),
        ],
        out_specs=pl.BlockSpec((1, 8, 128), lambda i: (i, 0, 0)),
        compiler_params=pltpu.CompilerParams(
            dimension_semantics=("parallel",),
            vmem_limit_bytes=32 * 1024 * 1024,
        ),
    )(x, emb)

    # Tiny final reduction over per-tile partials in JAX.
    return jnp.sum(partials[:, 0, 0])


def build_noise_distribution(frequencies):
    dist = np.power(frequencies.astype(np.float64), 0.75)
    dist /= dist.sum()
    return dist


def sample_negatives(dist, target_index, num_negative_samples, seed=0):
    """Rejection sampling from the unigram^0.75 distribution, excluding the positive
    (mirrors SigmoidBCELoss.sample). Deterministic via fixed numpy seed."""
    rng = np.random.default_rng(seed)
    V = dist.shape[0]
    B = target_index.shape[0]
    out = np.zeros((B, num_negative_samples), dtype=np.int32)
    for i in range(B):
        pos = int(target_index[i])
        got = 0
        while got < num_negative_samples:
            w = int(rng.choice(V, p=dist))
            if w != pos:
                out[i, got] = w
                got += 1
    return out


def reference_loss(input_embedding, output_weights, target_index, neg_indices):
    pos_embed = jnp.take(output_weights, target_index, axis=0)
    neg_embed = jnp.take(output_weights, neg_indices, axis=0)
    pos_logits = jnp.sum(input_embedding * pos_embed, axis=1)
    neg_logits = jnp.sum(neg_embed * input_embedding[:, None, :], axis=2)
    pos_loss = jnp.mean(_softplus(-pos_logits))
    neg_loss = jnp.mean(_softplus(neg_logits))
    return pos_loss + neg_loss


if __name__ == "__main__":
    # Synthetic vocabulary / frequencies (deterministic, in-script).
    V = 50          # num_words
    D = 128         # embedding dim
    B = 8           # batch size
    K = 5           # num_negative_samples

    frequencies = np.array([1000.0 / (i + 1) for i in range(V)], dtype=np.float32)
    dist = build_noise_distribution(frequencies)

    key = jax.random.PRNGKey(0)
    k1, k2, k3 = jax.random.split(key, 3)
    input_embedding = jax.random.normal(k1, (B, D), dtype=jnp.float32)
    output_weights = jax.random.normal(k2, (V, D), dtype=jnp.float32) * 0.1
    target_index = jax.random.randint(k3, (B,), 0, V, dtype=jnp.int32)

    neg_indices_np = sample_negatives(dist, np.asarray(target_index), K, seed=0)
    neg_indices = jnp.asarray(neg_indices_np, dtype=jnp.int32)

    loss = jax.block_until_ready(
        sigmoid_bce_loss(input_embedding, output_weights, target_index, neg_indices))

    ref = jax.block_until_ready(
        reference_loss(input_embedding, output_weights, target_index, neg_indices))

    # bf16 transport of the embeddings introduces <1% perturbation of the f32 reference.
    assert np.allclose(np.asarray(loss), np.asarray(ref), rtol=2e-2, atol=2e-2), (
        float(loss), float(ref))

    print("KERNEL_OK")
</pallas_src>

<mosaic_0001>
module attributes {stable_mosaic.version = 11 : i64} {
  func.func @sigmoid_bce_loss_kernel(%arg0: i32, %arg1: memref<8x128xbf16, #tpu.memory_space<vmem>>, %arg2: memref<6x8x128xbf16, #tpu.memory_space<vmem>>, %arg3: memref<1x8x128xf32, #tpu.memory_space<vmem>>) attributes {dimension_semantics = [#tpu.dimension_semantics<parallel>], iteration_bounds = array<i64: 1>, scalar_prefetch = 0 : i64, scratch_operands = 0 : i64, tpu.core_type = #tpu.core_type<tc>, window_params = [{transform_indices = @transform_0, window_bounds = array<i64: 8, 128>}, {transform_indices = @transform_1, window_bounds = array<i64: 6, 8, 128>}, {transform_indices = @transform_2, window_bounds = array<i64: 1, 8, 128>}]} {
    %c0 = arith.constant 0 : index
    %c0_0 = arith.constant 0 : index
    %0 = vector.load %arg1[%c0, %c0_0] : memref<8x128xbf16, #tpu.memory_space<vmem>>, vector<8x128xbf16>
    %1 = arith.extf %0 : vector<8x128xbf16> to vector<8x128xf32>
    %c0_1 = arith.constant 0 : index
    %c0_2 = arith.constant 0 : index
    %c0_3 = arith.constant 0 : index
    %2 = vector.load %arg2[%c0_1, %c0_2, %c0_3] : memref<6x8x128xbf16, #tpu.memory_space<vmem>>, vector<6x8x128xbf16>
    %3 = arith.extf %2 : vector<6x8x128xbf16> to vector<6x8x128xf32>
    %4 = vector.shape_cast %1 : vector<8x128xf32> to vector<1x8x128xf32>
    %5 = vector.broadcast %4 : vector<1x8x128xf32> to vector<6x8x128xf32>
    %6 = arith.mulf %3, %5 : vector<6x8x128xf32>
    %cst = arith.constant dense<0.000000e+00> : vector<6x8xf32>
    %7 = vector.multi_reduction <add>, %6, %cst [2] : vector<6x8x128xf32> to vector<6x8xf32>
    %8 = vector.shape_cast %7 : vector<6x8xf32> to vector<6x8x1xf32>
    %c8_i32 = arith.constant 8 : i32
    %9 = arith.muli %arg0, %c8_i32 : i32
    %10 = tpu.iota {dimensions = array<i32: 0>} : vector<8x1xi32>
    %11 = vector.broadcast %9 : i32 to vector<8x1xi32>
    %12 = arith.addi %11, %10 : vector<8x1xi32>
    %c8_i32_4 = arith.constant 8 : i32
    %13 = vector.broadcast %c8_i32_4 : i32 to vector<8x1xi32>
    %14 = arith.cmpi slt, %12, %13 : vector<8x1xi32>
    %15 = arith.extui %14 : vector<8x1xi1> to vector<8x1xi32>
    %16 = arith.sitofp %15 : vector<8x1xi32> to vector<8x1xf32>
    %17 = vector.extract_strided_slice %8 {offsets = [0, 0, 0], sizes = [1, 8, 1], strides = [1, 1, 1]} : vector<6x8x1xf32> to vector<1x8x1xf32>
    %18 = vector.shape_cast %17 : vector<1x8x1xf32> to vector<8x1xf32>
    %cst_5 = arith.constant 0.000000e+00 : f32
    %19 = vector.broadcast %cst_5 : f32 to vector<8x1xf32>
    %20 = arith.subf %19, %18 : vector<8x1xf32>
    %cst_6 = arith.constant 0.000000e+00 : f32
    %21 = vector.broadcast %cst_6 : f32 to vector<8x1xf32>
    %22 = arith.maximumf %20, %21 : vector<8x1xf32>
    %23 = math.absf %20 : vector<8x1xf32>
    %cst_7 = arith.constant 0.000000e+00 : f32
    %24 = vector.broadcast %cst_7 : f32 to vector<8x1xf32>
    %25 = arith.subf %24, %23 : vector<8x1xf32>
    %26 = math.exp %25 : vector<8x1xf32>
    %27 = math.log1p %26 : vector<8x1xf32>
    %28 = arith.addf %22, %27 : vector<8x1xf32>
    %29 = arith.mulf %28, %16 : vector<8x1xf32>
    %30 = vector.shape_cast %29 : vector<8x1xf32> to vector<1x8x1xf32>
    %cst_8 = arith.constant dense<0.000000e+00> : vector<1xf32>
    %31 = vector.multi_reduction <add>, %30, %cst_8 [1, 2] : vector<1x8x1xf32> to vector<1xf32>
    %32 = vector.shape_cast %31 : vector<1xf32> to vector<1x1x1xf32>
    %33 = vector.extract %32[0, 0, 0] : f32 from vector<1x1x1xf32>
    %34 = vector.extract_strided_slice %8 {offsets = [1, 0, 0], sizes = [5, 8, 1], strides = [1, 1, 1]} : vector<6x8x1xf32> to vector<5x8x1xf32>
    %cst_9 = arith.constant 0.000000e+00 : f32
    %35 = vector.broadcast %cst_9 : f32 to vector<5x8x1xf32>
    %36 = arith.maximumf %34, %35 : vector<5x8x1xf32>
    %37 = math.absf %34 : vector<5x8x1xf32>
    %cst_10 = arith.constant 0.000000e+00 : f32
    %38 = vector.broadcast %cst_10 : f32 to vector<5x8x1xf32>
    %39 = arith.subf %38, %37 : vector<5x8x1xf32>
    %40 = math.exp %39 : vector<5x8x1xf32>
    %41 = math.log1p %40 : vector<5x8x1xf32>
    %42 = arith.addf %36, %41 : vector<5x8x1xf32>
    %43 = vector.shape_cast %16 : vector<8x1xf32> to vector<1x8x1xf32>
    %44 = vector.broadcast %43 : vector<1x8x1xf32> to vector<5x8x1xf32>
    %45 = arith.mulf %42, %44 : vector<5x8x1xf32>
    %46 = vector.shape_cast %45 : vector<5x8x1xf32> to vector<1x5x8x1xf32>
    %cst_11 = arith.constant dense<0.000000e+00> : vector<1xf32>
    %47 = vector.multi_reduction <add>, %46, %cst_11 [1, 2, 3] : vector<1x5x8x1xf32> to vector<1xf32>
    %48 = vector.shape_cast %47 : vector<1xf32> to vector<1x1x1x1xf32>
    %49 = vector.extract %48[0, 0, 0, 0] : f32 from vector<1x1x1x1xf32>
    %cst_12 = arith.constant 1.250000e-01 : f32
    %50 = arith.mulf %33, %cst_12 : f32
    %cst_13 = arith.constant 2.500000e-02 : f32
    %51 = arith.mulf %49, %cst_13 : f32
    %52 = arith.addf %50, %51 : f32
    %53 = vector.broadcast %52 : f32 to vector<1x8x128xf32>
    %c0_14 = arith.constant 0 : index
    %c0_15 = arith.constant 0 : index
    %c0_16 = arith.constant 0 : index
    %54 = vector.load %arg3[%c0_14, %c0_15, %c0_16] : memref<1x8x128xf32, #tpu.memory_space<vmem>>, vector<1x8x128xf32>
    tpu.vector_store %arg3[%c0_14, %c0_15, %c0_16], %53 {strides = array<i32>} : memref<1x8x128xf32, #tpu.memory_space<vmem>>, vector<1x8x128xf32>,
    return
  }
  func.func @transform_0(%arg0: i32) -> (i32, i32) {
    %c0_i32 = arith.constant 0 : i32
    %c0_i32_0 = arith.constant 0 : i32
    return %arg0, %c0_i32 : i32, i32
  }
  func.func @transform_1(%arg0: i32) -> (i32, i32, i32) {
    %c0_i32 = arith.constant 0 : i32
    %c0_i32_0 = arith.constant 0 : i32
    %c0_i32_1 = arith.constant 0 : i32
    return %c0_i32, %arg0, %c0_i32_0 : i32, i32, i32
  }
  func.func @transform_2(%arg0: i32) -> (i32, i32, i32) {
    %c0_i32 = arith.constant 0 : i32
    %c0_i32_0 = arith.constant 0 : i32
    %c0_i32_1 = arith.constant 0 : i32
    return %arg0, %c0_i32, %c0_i32_0 : i32, i32, i32
  }
}

</mosaic_0001>

<llo_original>
// kernel: tpu_custom_call.1
$region0: #{tpu_custom_call.1}
  #allocation0 [shape = 'u32[]', space=smem, size = 0x4, offset = 0x4, fixed_abs, tag = 'smem constant byte address 0x4 - core index']
  #allocation1 [shape = 'u32[144,128]{1,0:T(1,128)}', space=vmem, size = 0x12000, scoped, tag = 'internal scratch']
  %s0 = inlined_call_operand.hbm [shape: bf16[8,128], index: 0, kind: input, shape index: {}]
  %s1 = inlined_call_operand.hbm [shape: bf16[6,8,128], index: 1, kind: input, shape index: {}]
  %s2 = inlined_call_operand.hbm [shape: f32[1,8,128], index: 2, kind: output, shape index: {}]
  %s3 = sld [smem:[#allocation0]]
  $region26: #{tpu_custom_call.1} parent=0
    _
  %s5 = ssub.s32 1, %s3
  %s6 = scalar_select 0, %s5, %s3
  $region1: #{tpu_custom_call.1} parent=0
    #allocation2 [shape = 'u8[2048]{0}', space=vmem, size = 0x800, scoped, tag = 'input window, operand 0, single buffered']
    #allocation3 [shape = 's32[1]{0}', space=sflag, size = 0x4, scoped, tag = 'scoped memory for tpu_custom_call.1']
    #allocation4 [shape = 's32[1]{0}', space=sflag, size = 0x4, scoped, tag = 'scoped memory for tpu_custom_call.1']
    #allocation5 [shape = 'u8[12288]{0}', space=vmem, size = 0x3000, scoped, tag = 'input window, operand 1, single buffered']
    #allocation6 [shape = 's32[1]{0}', space=sflag, size = 0x4, scoped, tag = 'scoped memory for tpu_custom_call.1']
    #allocation7 [shape = 'u8[4096]{0}', space=vmem, size = 0x1000, scoped, tag = 'output window, operand 0, single buffered']
    %7 = vsyncpa [#allocation3], 0
    %8 = vsyncpa [#allocation6], 0
    %9 = vsyncpa [#allocation4], 0
    // Predicated region
    $region2: #{tpu_custom_call.1} parent=1 // pred_check
      _
    $region3: #{tpu_custom_call.1} parent=1 // pred_check_branch
      %11 = sbr.rel (0) target = $region5
    $region4: #{tpu_custom_call.1} parent=1 // pred_region
      %s13 = ssub.s32 64, 64
      %14 = vsyncadd [#allocation3], %s13
      %s16 = sshll.u32 [#allocation2], 4
      %s17 = int_to_ptr.vmem [resolvable:$true] %s16
      %19 = dma.hbm_to_vmem [thread:$0]  %s0, 64, %s17, [#allocation3]
    $region5: #{tpu_custom_call.1} parent=1 // pred_fallthru
      _
    // Predicated region
    $region6: #{tpu_custom_call.1} parent=1 // pred_check
      _
    $region7: #{tpu_custom_call.1} parent=1 // pred_check_branch
      %21 = sbr.rel (0) target = $region9
    $region8: #{tpu_custom_call.1} parent=1 // pred_region
      %s23 = ssub.s32 384, 384
      %24 = vsyncadd [#allocation6], %s23
      %s25 = sshll.u32 [#allocation5], 4
      %s26 = int_to_ptr.vmem [resolvable:$true] %s25
      %31 = dma.hbm_to_vmem [thread:$0]  %s1, 384, %s26, [#allocation6], 64, 64, 4
    $region9: #{tpu_custom_call.1} parent=1 // pred_fallthru
      _
    // Predicated region
    $region10: #{tpu_custom_call.1} parent=1 // pred_check
      _
    $region11: #{tpu_custom_call.1} parent=1 // pred_check_branch
      %33 = sbr.rel (0) target = $region13
    $region12: #{tpu_custom_call.1} parent=1 // pred_region
      %34 = dma.done [#allocation3], 64
    $region13: #{tpu_custom_call.1} parent=1 // pred_fallthru
      _
    // Predicated region
    $region14: #{tpu_custom_call.1} parent=1 // pred_check
      _
    $region15: #{tpu_custom_call.1} parent=1 // pred_check_branch
      %36 = sbr.rel (0) target = $region17
    $region16: #{tpu_custom_call.1} parent=1 // pred_region
      %37 = dma.done [#allocation6], 384
    $region17: #{tpu_custom_call.1} parent=1 // pred_fallthru
      _
    %v38 = vld [vmem:[#allocation2] sm:$0xf]
    %v39 = vunpack.c.l.bf16 %v38
    %v40 = vld [vmem:[#allocation5] sm:$0xf]
    %v41 = vld [vmem:[#allocation5 + $0x4] sm:$0xf]
    %v42 = vld [vmem:[#allocation5 + $0x8] sm:$0xf]
    %v43 = vld [vmem:[#allocation5 + $0xc] sm:$0xf]
    %v44 = vld [vmem:[#allocation5 + $0x10] sm:$0xf]
    %v45 = vld [vmem:[#allocation5 + $0x14] sm:$0xf]
    %v46 = vunpack.c.l.bf16 %v40
    %v47 = vunpack.c.l.bf16 %v41
    %v48 = vunpack.c.l.bf16 %v42
    %v49 = vunpack.c.l.bf16 %v43
    %v50 = vunpack.c.l.bf16 %v44
    %v51 = vunpack.c.l.bf16 %v45
    %v52 = vmul.f32 %v46, %v39
    %v53 = vmul.f32 %v47, %v39
    %v54 = vmul.f32 %v48, %v39
    %v55 = vmul.f32 %v49, %v39
    %v56 = vmul.f32 %v50, %v39
    %v57 = vmul.f32 %v51, %v39
    %58 = vadd.xlane.f32.xlu0 %v52
    %v59 = vpop.xlane.xlu0 %58
    %60 = vadd.xlane.f32.xlu0 %v53
    %v61 = vpop.xlane.xlu0 %60
    %62 = vadd.xlane.f32.xlu0 %v54
    %v63 = vpop.xlane.xlu0 %62
    %64 = vadd.xlane.f32.xlu0 %v55
    %v65 = vpop.xlane.xlu0 %64
    %66 = vadd.xlane.f32.xlu0 %v56
    %v67 = vpop.xlane.xlu0 %66
    %68 = vadd.xlane.f32.xlu0 %v57
    %v69 = vpop.xlane.xlu0 %68
    %s70 = smul.u32 0, 8
    %v71 = vlaneseq
    %v72 = vshrl.u32 %v71, 7
    %v73 = vstv %s70
    %v74 = vadd.s32 %v73, %v72
    %vm75 = vcmp.lt.s32.totalorder %v74, 8
    %v76 = vsel %vm75, 1, 0
    %v77 = vcvt.s32.f32 %v76
    %v78 = vsub.f32 0.0, %v59
    %v79 = vmax.f32 %v78, 0.0
    %v80 = vand.u32 2147483647, %v78
    %v81 = vsub.f32 0.0, %v80
    %v82 = vmul.f32 %v81, 1.442695
    %v83 = vpow.pop %v82
    %v84 = vadd.f32 %v83, 1.0
    %v85 = vlog2.pop %v84
    %v86 = vmul.f32 %v85, 0.6931472
    %v87 = vmul.f32 -0.5, %v83
    %v88 = vadd.f32 %v87, 1.0
    %v89 = vmul.f32 %v88, %v83
    %v90 = vand.u32 2147483647, %v83
    %vm91 = vcmp.lt.f32.partialorder %v90, 0.0004427343
    %v92 = vsel %vm91, %v89, %v86
    %v93 = vadd.f32 %v79, %v92
    %v94 = vmul.f32 %v93, %v77
    %vm95 = vcmask 7168
    %v96 = vsel %vm95, %v94, 0.0
    %97 = vadd.xlane.f32.xlu0 %v96
    %v98 = vpop.xlane.xlu0 %97
    %v99 = vrot.slane %v98, 4
    %v100 = vadd.f32 %v98, %v99
    %v101 = vrot.slane %v100, 2
    %v102 = vadd.f32 %v100, %v101
    %v103 = vrot.slane %v102, 1
    %v104 = vadd.f32 %v102, %v103
    %s105 = vtos %v104
    %v106 = vmax.f32 %v61, 0.0
    %v107 = vmax.f32 %v63, 0.0
    %v108 = vmax.f32 %v65, 0.0
    %v109 = vmax.f32 %v67, 0.0
    %v110 = vmax.f32 %v69, 0.0
    %v111 = vand.u32 2147483647, %v61
    %v112 = vand.u32 2147483647, %v63
    %v113 = vand.u32 2147483647, %v65
    %v114 = vand.u32 2147483647, %v67
    %v115 = vand.u32 2147483647, %v69
    %v116 = vsub.f32 0.0, %v111
    %v117 = vsub.f32 0.0, %v112
    %v118 = vsub.f32 0.0, %v113
    %v119 = vsub.f32 0.0, %v114
    %v120 = vsub.f32 0.0, %v115
    %v121 = vmul.f32 %v116, 1.442695
    %v122 = vpow.pop %v121
    %v123 = vmul.f32 %v117, 1.442695
    %v124 = vpow.pop %v123
    %v125 = vmul.f32 %v118, 1.442695
    %v126 = vpow.pop %v125
    %v127 = vmul.f32 %v119, 1.442695
    %v128 = vpow.pop %v127
    %v129 = vmul.f32 %v120, 1.442695
    %v130 = vpow.pop %v129
    %v131 = vadd.f32 %v122, 1.0
    %v132 = vlog2.pop %v131
    %v133 = vmul.f32 %v132, 0.6931472
    %v134 = vmul.f32 -0.5, %v122
    %v135 = vadd.f32 %v134, 1.0
    %v136 = vmul.f32 %v135, %v122
    %v137 = vand.u32 2147483647, %v122
    %vm138 = vcmp.lt.f32.partialorder %v137, 0.0004427343
    %v139 = vsel %vm138, %v136, %v133
    %v140 = vadd.f32 %v124, 1.0
    %v141 = vlog2.pop %v140
    %v142 = vmul.f32 %v141, 0.6931472
    %v143 = vmul.f32 -0.5, %v124
    %v144 = vadd.f32 %v143, 1.0
    %v145 = vmul.f32 %v144, %v124
    %v146 = vand.u32 2147483647, %v124
    %vm147 = vcmp.lt.f32.partialorder %v146, 0.0004427343
    %v148 = vsel %vm147, %v145, %v142
    %v149 = vadd.f32 %v126, 1.0
    %v150 = vlog2.pop %v149
    %v151 = vmul.f32 %v150, 0.6931472
    %v152 = vmul.f32 -0.5, %v126
    %v153 = vadd.f32 %v152, 1.0
    %v154 = vmul.f32 %v153, %v126
    %v155 = vand.u32 2147483647, %v126
    %vm156 = vcmp.lt.f32.partialorder %v155, 0.0004427343
    %v157 = vsel %vm156, %v154, %v151
    %v158 = vadd.f32 %v128, 1.0
    %v159 = vlog2.pop %v158
    %v160 = vmul.f32 %v159, 0.6931472
    %v161 = vmul.f32 -0.5, %v128
    %v162 = vadd.f32 %v161, 1.0
    %v163 = vmul.f32 %v162, %v128
    %v164 = vand.u32 2147483647, %v128
    %vm165 = vcmp.lt.f32.partialorder %v164, 0.0004427343
    %v166 = vsel %vm165, %v163, %v160
    %v167 = vadd.f32 %v130, 1.0
    %v168 = vlog2.pop %v167
    %v169 = vmul.f32 %v168, 0.6931472
    %v170 = vmul.f32 -0.5, %v130
    %v171 = vadd.f32 %v170, 1.0
    %v172 = vmul.f32 %v171, %v130
    %v173 = vand.u32 2147483647, %v130
    %vm174 = vcmp.lt.f32.partialorder %v173, 0.0004427343
    %v175 = vsel %vm174, %v172, %v169
    %v176 = vadd.f32 %v106, %v139
    %v177 = vadd.f32 %v107, %v148
    %v178 = vadd.f32 %v108, %v157
    %v179 = vadd.f32 %v109, %v166
    %v180 = vadd.f32 %v110, %v175
    %v181 = vmul.f32 %v176, %v77
    %v182 = vmul.f32 %v177, %v77
    %v183 = vmul.f32 %v178, %v77
    %v184 = vmul.f32 %v179, %v77
    %v185 = vmul.f32 %v180, %v77
    %v186 = vsel %vm95, %v181, 0.0
    %v187 = vsel %vm95, %v182, 0.0
    %v188 = vadd.f32 %v186, %v187
    %v189 = vsel %vm95, %v183, 0.0
    %v190 = vadd.f32 %v188, %v189
    %v191 = vsel %vm95, %v184, 0.0
    %v192 = vadd.f32 %v190, %v191
    %v193 = vsel %vm95, %v185, 0.0
    %v194 = vadd.f32 %v192, %v193
    %195 = vadd.xlane.f32.xlu0 %v194
    %v196 = vpop.xlane.xlu0 %195
    %v197 = vrot.slane %v196, 4
    %v198 = vadd.f32 %v196, %v197
    %v199 = vrot.slane %v198, 2
    %v200 = vadd.f32 %v198, %v199
    %v201 = vrot.slane %v200, 1
    %v202 = vadd.f32 %v200, %v201
    %s203 = vtos %v202
    %s204 = smul.f32 %s105, 0.125
    %s205 = smul.f32 %s203, 0.025
    %s206 = sadd.f32 %s204, %s205
    %v207 = vstv %s206
    %208 = vst [vmem:[#allocation7] sm:$0xff] %v207
    // Predicated region
    $region18: #{tpu_custom_call.1} parent=1 // pred_check
      _
    $region19: #{tpu_custom_call.1} parent=1 // pred_check_branch
      %210 = sbr.rel (0) target = $region21
    $region20: #{tpu_custom_call.1} parent=1 // pred_region
      %s212 = ssub.s32 128, 128
      %213 = vsyncadd [#allocation4], %s212
      %s215 = sshll.u32 [#allocation7], 4
      %s216 = int_to_ptr.vmem [resolvable:$true] %s215
      %218 = dma.vmem_to_hbm [thread:$0]  %s216, 128, %s2, [#allocation4]
    $region21: #{tpu_custom_call.1} parent=1 // pred_fallthru
      _
    // Predicated region
    $region22: #{tpu_custom_call.1} parent=1 // pred_check
      _
    $region23: #{tpu_custom_call.1} parent=1 // pred_check_branch
      %220 = sbr.rel (0) target = $region25
    $region24: #{tpu_custom_call.1} parent=1 // pred_region
      %221 = dma.done [#allocation4], 128
    $region25: #{tpu_custom_call.1} parent=1 // pred_fallthru
      _
    %222 = vsyncpa [#allocation3], 1
    %223 = vsyncpa [#allocation6], 1
    %224 = vsyncpa [#allocation4], 1

</llo_original>
